<compile_context>
chip_gen: v7x
topology: tpu7x:2x2x1
jax: 0.10.0
libtpu: 0.0.40
codegen_flags: <defaults>
</compile_context>

<pallas_src>
import functools

import jax
import jax.numpy as jnp
from jax import lax
from jax.experimental import pallas as pl
from jax.experimental.pallas import tpu as pltpu


def _cc_kernel(x_ref, wb_ref, bb_ref, w1_ref, b1_ref, w2_ref, b2_ref, out_ref,
               *, rep_dim, feature_dim, class_num, out_width):
    # ---- backbone stub: GAP over flattened spatial (lane-dense) + Linear + ReLU ----
    x = x_ref[...]                                    # (TB, C, H*W) f32
    pooled = jnp.mean(x, axis=2)                      # (TB, C)
    h = jnp.dot(pooled.astype(jnp.bfloat16), wb_ref[...],
                preferred_element_type=jnp.float32) + bb_ref[...]
    h = jnp.maximum(h, 0.0)                           # (TB, rep_dim)

    # ---- fused first layers of instance + cluster projectors (one GEMM) ----
    t = jnp.dot(h.astype(jnp.bfloat16), w1_ref[...],
                preferred_element_type=jnp.float32) + b1_ref[...]
    t = jnp.maximum(t, 0.0)                           # (TB, 2*rep_dim)

    # ---- fused second layers: block-diagonal padded weight -> lane-dense slab ----
    # lanes [0, feature_dim)                       : raw instance features
    # lanes [feature_dim, feature_dim+class_num)   : cluster logits
    # remaining lanes                              : zeros
    y = jnp.dot(t.astype(jnp.bfloat16), w2_ref[...],
                preferred_element_type=jnp.float32) + b2_ref[...]   # (TB, out_width)

    lane = lax.broadcasted_iota(jnp.int32, y.shape, 1)
    is_z = lane < feature_dim
    is_c = (lane >= feature_dim) & (lane < feature_dim + class_num)

    # L2 normalize over the instance lanes (torch F.normalize, eps=1e-12 -> clamp sumsq)
    sumsq = jnp.sum(jnp.where(is_z, y * y, 0.0), axis=1, keepdims=True)
    inv_norm = lax.rsqrt(jnp.maximum(sumsq, 1e-24))

    # Softmax over the cluster lanes only (other lanes masked to -inf -> exp == 0)
    logits = jnp.where(is_c, y, -1e30)
    m = jnp.max(logits, axis=1, keepdims=True)
    e = jnp.exp(logits - m)
    inv_sum = pl.reciprocal(jnp.sum(e, axis=1, keepdims=True), approx=True)

    # Single full-width (lane-dense) store: [ z_normalized | softmax(c) | zeros ]
    out_ref[...] = jnp.where(is_z, y * inv_norm, e * inv_sum)


def make_cc_forward(params, B, C, H, W, rep_dim, feature_dim, class_num, tb=8):
    wb, bb, wi1, bi1, wi2, bi2, wc1, bc1, wc2, bc2 = params
    HW = H * W
    out_width = 128                       # lane-dense output slab
    assert feature_dim + class_num <= out_width

    rows = 2 * B                          # both views in one call
    rows_pad = ((rows + tb - 1) // tb) * tb
    grid = (rows_pad // tb,)

    # ---- fuse projector weights once, outside the kernel ----
    w1 = jnp.concatenate([wi1, wc1], axis=1)                      # (R, 2R)
    b1 = jnp.concatenate([bi1, bc1], axis=1)                      # (1, 2R)
    w2 = jnp.zeros((2 * rep_dim, out_width), jnp.float32)
    w2 = w2.at[:rep_dim, :feature_dim].set(wi2)
    w2 = w2.at[rep_dim:, feature_dim:feature_dim + class_num].set(wc2)
    b2 = jnp.zeros((1, out_width), jnp.float32)
    b2 = b2.at[:, :feature_dim].set(bi2)
    b2 = b2.at[:, feature_dim:feature_dim + class_num].set(bc2)

    # bf16 matmul operands (weights); biases / elementwise stay f32.
    wb_bf = wb.astype(jnp.bfloat16)
    w1_bf = w1.astype(jnp.bfloat16)
    w2_bf = w2.astype(jnp.bfloat16)

    kernel = functools.partial(
        _cc_kernel, rep_dim=rep_dim, feature_dim=feature_dim,
        class_num=class_num, out_width=out_width)

    call = pl.pallas_call(
        kernel,
        out_shape=jax.ShapeDtypeStruct((rows_pad, out_width), jnp.float32),
        grid_spec=pltpu.PrefetchScalarGridSpec(
            num_scalar_prefetch=0,
            grid=grid,
            in_specs=[
                pl.BlockSpec((tb, C, HW), lambda i: (i, 0, 0)),
                pl.BlockSpec((C, rep_dim), lambda i: (0, 0)),
                pl.BlockSpec((1, rep_dim), lambda i: (0, 0)),
                pl.BlockSpec((rep_dim, 2 * rep_dim), lambda i: (0, 0)),
                pl.BlockSpec((1, 2 * rep_dim), lambda i: (0, 0)),
                pl.BlockSpec((2 * rep_dim, out_width), lambda i: (0, 0)),
                pl.BlockSpec((1, out_width), lambda i: (0, 0)),
            ],
            out_specs=pl.BlockSpec((tb, out_width), lambda i: (i, 0)),
        ),
        compiler_params=pltpu.CompilerParams(
            dimension_semantics=("parallel",)),
    )

    @jax.jit
    def forward(x_i, x_j):
        # Stack both views; flatten spatial dims so the GAP reduce is lane-dense.
        x = jnp.concatenate([x_i, x_j], axis=0).reshape(rows, C, HW)
        if rows_pad != rows:
            x = jnp.pad(x, ((0, rows_pad - rows), (0, 0), (0, 0)))
        out = call(x, wb_bf, bb, w1_bf, b1, w2_bf, b2)
        z = out[:rows, :feature_dim]
        c = out[:rows, feature_dim:feature_dim + class_num]
        return z[:B], z[B:], c[:B], c[B:]

    return forward


def init_params(key, C, rep_dim, feature_dim, class_num):
    ks = jax.random.split(key, 10)
    scale = 0.1

    def lin(kw, fan_in, fan_out):
        return jax.random.normal(kw, (fan_in, fan_out), jnp.float32) * scale

    wb = lin(ks[0], C, rep_dim)
    bb = jax.random.normal(ks[1], (1, rep_dim), jnp.float32) * scale
    wi1 = lin(ks[2], rep_dim, rep_dim)
    bi1 = jax.random.normal(ks[3], (1, rep_dim), jnp.float32) * scale
    wi2 = lin(ks[4], rep_dim, feature_dim)
    bi2 = jax.random.normal(ks[5], (1, feature_dim), jnp.float32) * scale
    wc1 = lin(ks[6], rep_dim, rep_dim)
    bc1 = jax.random.normal(ks[7], (1, rep_dim), jnp.float32) * scale
    wc2 = lin(ks[8], rep_dim, class_num)
    bc2 = jax.random.normal(ks[9], (1, class_num), jnp.float32) * scale
    return (wb, bb, wi1, bi1, wi2, bi2, wc1, bc1, wc2, bc2)


if __name__ == "__main__":
    B, C, H, W = 2, 4, 16, 16
    rep_dim, feature_dim, class_num = 32, 16, 8

    key = jax.random.PRNGKey(0)
    k_xi, k_xj, k_p = jax.random.split(key, 3)
    x_i = jax.random.normal(k_xi, (B, C, H, W), jnp.float32)
    x_j = jax.random.normal(k_xj, (B, C, H, W), jnp.float32)

    params = init_params(k_p, C, rep_dim, feature_dim, class_num)
    forward = make_cc_forward(params, B, C, H, W, rep_dim, feature_dim, class_num)

    z_i, z_j, c_i, c_j = forward(x_i, x_j)
    jax.block_until_ready((z_i, z_j, c_i, c_j))

    # sanity: shapes, z rows unit-norm, c rows sum to 1 (tolerances account for
    # bf16 matmul operands and approx EUP reciprocal in the softmax denominator)
    assert z_i.shape == (B, feature_dim) and z_j.shape == (B, feature_dim)
    assert c_i.shape == (B, class_num) and c_j.shape == (B, class_num)
    assert jnp.allclose(jnp.linalg.norm(z_i, axis=1), 1.0, atol=1e-3)
    assert jnp.allclose(jnp.linalg.norm(z_j, axis=1), 1.0, atol=1e-3)
    assert jnp.allclose(jnp.sum(c_i, axis=1), 1.0, atol=5e-3)
    assert jnp.allclose(jnp.sum(c_j, axis=1), 1.0, atol=5e-3)
    assert bool(jnp.all(c_i >= 0.0)) and bool(jnp.all(c_j >= 0.0))

    print("KERNEL_OK")
</pallas_src>

<mosaic_0001>
module attributes {stable_mosaic.version = 11 : i64} {
  func.func @_cc_kernel(%arg0: i32, %arg1: memref<8x4x256xf32, #tpu.memory_space<vmem>>, %arg2: memref<4x32xbf16, #tpu.memory_space<vmem>>, %arg3: memref<1x32xf32, #tpu.memory_space<vmem>>, %arg4: memref<32x64xbf16, #tpu.memory_space<vmem>>, %arg5: memref<1x64xf32, #tpu.memory_space<vmem>>, %arg6: memref<64x128xbf16, #tpu.memory_space<vmem>>, %arg7: memref<1x128xf32, #tpu.memory_space<vmem>>, %arg8: memref<8x128xf32, #tpu.memory_space<vmem>>) attributes {dimension_semantics = [#tpu.dimension_semantics<parallel>], iteration_bounds = array<i64: 1>, scalar_prefetch = 0 : i64, scratch_operands = 0 : i64, tpu.core_type = #tpu.core_type<tc>, window_params = [{transform_indices = @transform_0, window_bounds = array<i64: 8, 4, 256>}, {pipeline_mode = #tpu.pipeline_mode<synchronous>, transform_indices = @transform_1, window_bounds = array<i64: 4, 32>}, {pipeline_mode = #tpu.pipeline_mode<synchronous>, transform_indices = @transform_2, window_bounds = array<i64: 1, 32>}, {pipeline_mode = #tpu.pipeline_mode<synchronous>, transform_indices = @transform_3, window_bounds = array<i64: 32, 64>}, {pipeline_mode = #tpu.pipeline_mode<synchronous>, transform_indices = @transform_4, window_bounds = array<i64: 1, 64>}, {pipeline_mode = #tpu.pipeline_mode<synchronous>, transform_indices = @transform_5, window_bounds = array<i64: 64, 128>}, {pipeline_mode = #tpu.pipeline_mode<synchronous>, transform_indices = @transform_6, window_bounds = array<i64: 1, 128>}, {transform_indices = @transform_7, window_bounds = array<i64: 8, 128>}]} {
    %c0 = arith.constant 0 : index
    %c0_0 = arith.constant 0 : index
    %c0_1 = arith.constant 0 : index
    %0 = vector.load %arg1[%c0, %c0_0, %c0_1] : memref<8x4x256xf32, #tpu.memory_space<vmem>>, vector<8x4x256xf32>
    %cst = arith.constant dense<0.000000e+00> : vector<8x4xf32>
    %1 = vector.multi_reduction <add>, %0, %cst [2] : vector<8x4x256xf32> to vector<8x4xf32>
    %cst_2 = arith.constant 2.560000e+02 : f32
    %2 = vector.broadcast %cst_2 : f32 to vector<8x4xf32>
    %3 = arith.divf %1, %2 : vector<8x4xf32>
    %4 = arith.truncf %3 : vector<8x4xf32> to vector<8x4xbf16>
    %c0_3 = arith.constant 0 : index
    %c0_4 = arith.constant 0 : index
    %5 = vector.load %arg2[%c0_3, %c0_4] : memref<4x32xbf16, #tpu.memory_space<vmem>>, vector<4x32xbf16>
    %cst_5 = arith.constant dense<0.000000e+00> : vector<8x32xf32>
    %6 = tpu.matmul %4, %5, %cst_5 {dimension_numbers = #tpu.dot_dimension_numbers<[1], [0], [0], [1], [0, 0, 1, 1], [], []>} : vector<8x4xbf16>, vector<4x32xbf16>, vector<8x32xf32> -> vector<8x32xf32>
    %c0_6 = arith.constant 0 : index
    %c0_7 = arith.constant 0 : index
    %7 = vector.load %arg3[%c0_6, %c0_7] : memref<1x32xf32, #tpu.memory_space<vmem>>, vector<1x32xf32>
    %8 = vector.broadcast %7 : vector<1x32xf32> to vector<8x32xf32>
    %9 = arith.addf %6, %8 : vector<8x32xf32>
    %cst_8 = arith.constant 0.000000e+00 : f32
    %10 = vector.broadcast %cst_8 : f32 to vector<8x32xf32>
    %11 = arith.maximumf %9, %10 : vector<8x32xf32>
    %12 = arith.truncf %11 : vector<8x32xf32> to vector<8x32xbf16>
    %c0_9 = arith.constant 0 : index
    %c0_10 = arith.constant 0 : index
    %13 = vector.load %arg4[%c0_9, %c0_10] : memref<32x64xbf16, #tpu.memory_space<vmem>>, vector<32x64xbf16>
    %cst_11 = arith.constant dense<0.000000e+00> : vector<8x64xf32>
    %14 = tpu.matmul %12, %13, %cst_11 {dimension_numbers = #tpu.dot_dimension_numbers<[1], [0], [0], [1], [0, 0, 1, 1], [], []>} : vector<8x32xbf16>, vector<32x64xbf16>, vector<8x64xf32> -> vector<8x64xf32>
    %c0_12 = arith.constant 0 : index
    %c0_13 = arith.constant 0 : index
    %15 = vector.load %arg5[%c0_12, %c0_13] : memref<1x64xf32, #tpu.memory_space<vmem>>, vector<1x64xf32>
    %16 = vector.broadcast %15 : vector<1x64xf32> to vector<8x64xf32>
    %17 = arith.addf %14, %16 : vector<8x64xf32>
    %cst_14 = arith.constant 0.000000e+00 : f32
    %18 = vector.broadcast %cst_14 : f32 to vector<8x64xf32>
    %19 = arith.maximumf %17, %18 : vector<8x64xf32>
    %20 = arith.truncf %19 : vector<8x64xf32> to vector<8x64xbf16>
    %c0_15 = arith.constant 0 : index
    %c0_16 = arith.constant 0 : index
    %21 = vector.load %arg6[%c0_15, %c0_16] : memref<64x128xbf16, #tpu.memory_space<vmem>>, vector<64x128xbf16>
    %cst_17 = arith.constant dense<0.000000e+00> : vector<8x128xf32>
    %22 = tpu.matmul %20, %21, %cst_17 {dimension_numbers = #tpu.dot_dimension_numbers<[1], [0], [0], [1], [0, 0, 1, 1], [], []>} : vector<8x64xbf16>, vector<64x128xbf16>, vector<8x128xf32> -> vector<8x128xf32>
    %c0_18 = arith.constant 0 : index
    %c0_19 = arith.constant 0 : index
    %23 = vector.load %arg7[%c0_18, %c0_19] : memref<1x128xf32, #tpu.memory_space<vmem>>, vector<1x128xf32>
    %24 = vector.broadcast %23 : vector<1x128xf32> to vector<8x128xf32>
    %25 = arith.addf %22, %24 : vector<8x128xf32>
    %26 = tpu.iota {dimensions = array<i32: 1>} : vector<8x128xi32>
    %c16_i32 = arith.constant 16 : i32
    %27 = vector.broadcast %c16_i32 : i32 to vector<8x128xi32>
    %28 = arith.cmpi slt, %26, %27 : vector<8x128xi32>
    %c16_i32_20 = arith.constant 16 : i32
    %29 = vector.broadcast %c16_i32_20 : i32 to vector<8x128xi32>
    %30 = arith.cmpi sge, %26, %29 : vector<8x128xi32>
    %c24_i32 = arith.constant 24 : i32
    %31 = vector.broadcast %c24_i32 : i32 to vector<8x128xi32>
    %32 = arith.cmpi slt, %26, %31 : vector<8x128xi32>
    %33 = arith.andi %30, %32 : vector<8x128xi1>
    %34 = arith.mulf %25, %25 : vector<8x128xf32>
    %cst_21 = arith.constant 0.000000e+00 : f32
    %35 = vector.broadcast %cst_21 : f32 to vector<8x128xf32>
    %36 = arith.select %28, %34, %35 : vector<8x128xi1>, vector<8x128xf32>
    %cst_22 = arith.constant dense<0.000000e+00> : vector<8xf32>
    %37 = vector.multi_reduction <add>, %36, %cst_22 [1] : vector<8x128xf32> to vector<8xf32>
    %38 = vector.shape_cast %37 : vector<8xf32> to vector<8x1xf32>
    %cst_23 = arith.constant 1.000000e-24 : f32
    %39 = vector.broadcast %cst_23 : f32 to vector<8x1xf32>
    %40 = arith.maximumf %38, %39 : vector<8x1xf32>
    %41 = math.rsqrt %40 : vector<8x1xf32>
    %cst_24 = arith.constant -1.000000e+30 : f32
    %42 = vector.broadcast %cst_24 : f32 to vector<8x128xf32>
    %43 = arith.select %33, %25, %42 : vector<8x128xi1>, vector<8x128xf32>
    %cst_25 = arith.constant dense<0xFF800000> : vector<8xf32>
    %44 = vector.multi_reduction <maximumf>, %43, %cst_25 [1] : vector<8x128xf32> to vector<8xf32>
    %45 = vector.shape_cast %44 : vector<8xf32> to vector<8x1xf32>
    %46 = vector.broadcast %45 : vector<8x1xf32> to vector<8x128xf32>
    %47 = arith.subf %43, %46 : vector<8x128xf32>
    %48 = math.exp %47 : vector<8x128xf32>
    %cst_26 = arith.constant dense<0.000000e+00> : vector<8xf32>
    %49 = vector.multi_reduction <add>, %48, %cst_26 [1] : vector<8x128xf32> to vector<8xf32>
    %50 = vector.shape_cast %49 : vector<8xf32> to vector<8x1xf32>
    %51 = tpu.reciprocal %50 {approx = true} : vector<8x1xf32> -> vector<8x1xf32>
    %52 = vector.broadcast %41 : vector<8x1xf32> to vector<8x128xf32>
    %53 = arith.mulf %25, %52 : vector<8x128xf32>
    %54 = vector.broadcast %51 : vector<8x1xf32> to vector<8x128xf32>
    %55 = arith.mulf %48, %54 : vector<8x128xf32>
    %56 = arith.select %28, %53, %55 : vector<8x128xi1>, vector<8x128xf32>
    %c0_27 = arith.constant 0 : index
    %c0_28 = arith.constant 0 : index
    %57 = vector.load %arg8[%c0_27, %c0_28] : memref<8x128xf32, #tpu.memory_space<vmem>>, vector<8x128xf32>
    tpu.vector_store %arg8[%c0_27, %c0_28], %56 {strides = array<i32>} : memref<8x128xf32, #tpu.memory_space<vmem>>, vector<8x128xf32>,
    return
  }
  func.func @transform_0(%arg0: i32) -> (i32, i32, i32) {
    %c0_i32 = arith.constant 0 : i32
    %c0_i32_0 = arith.constant 0 : i32
    %c0_i32_1 = arith.constant 0 : i32
    return %arg0, %c0_i32, %c0_i32_0 : i32, i32, i32
  }
  func.func @transform_1(%arg0: i32) -> (i32, i32) {
    %c0_i32 = arith.constant 0 : i32
    %c0_i32_0 = arith.constant 0 : i32
    %c0_i32_1 = arith.constant 0 : i32
    return %c0_i32, %c0_i32_0 : i32, i32
  }
  func.func @transform_2(%arg0: i32) -> (i32, i32) {
    %c0_i32 = arith.constant 0 : i32
    %c0_i32_0 = arith.constant 0 : i32
    %c0_i32_1 = arith.constant 0 : i32
    return %c0_i32, %c0_i32_0 : i32, i32
  }
  func.func @transform_3(%arg0: i32) -> (i32, i32) {
    %c0_i32 = arith.constant 0 : i32
    %c0_i32_0 = arith.constant 0 : i32
    %c0_i32_1 = arith.constant 0 : i32
    return %c0_i32, %c0_i32_0 : i32, i32
  }
  func.func @transform_4(%arg0: i32) -> (i32, i32) {
    %c0_i32 = arith.constant 0 : i32
    %c0_i32_0 = arith.constant 0 : i32
    %c0_i32_1 = arith.constant 0 : i32
    return %c0_i32, %c0_i32_0 : i32, i32
  }
  func.func @transform_5(%arg0: i32) -> (i32, i32) {
    %c0_i32 = arith.constant 0 : i32
    %c0_i32_0 = arith.constant 0 : i32
    %c0_i32_1 = arith.constant 0 : i32
    return %c0_i32, %c0_i32_0 : i32, i32
  }
  func.func @transform_6(%arg0: i32) -> (i32, i32) {
    %c0_i32 = arith.constant 0 : i32
    %c0_i32_0 = arith.constant 0 : i32
    %c0_i32_1 = arith.constant 0 : i32
    return %c0_i32, %c0_i32_0 : i32, i32
  }
  func.func @transform_7(%arg0: i32) -> (i32, i32) {
    %c0_i32 = arith.constant 0 : i32
    %c0_i32_0 = arith.constant 0 : i32
    return %arg0, %c0_i32 : i32, i32
  }
}

</mosaic_0001>

<llo_original>
// kernel: forward.1
$region0: #{forward.1}
  #allocation0 [shape = 'u32[]', space=smem, size = 0x4, offset = 0x4, fixed_abs, tag = 'smem constant byte address 0x4 - core index']
  #allocation1 [shape = 'u32[144,128]{1,0:T(1,128)}', space=vmem, size = 0x12000, scoped, tag = 'internal scratch']
  %s0 = inlined_call_operand.vmem [shape: f32[8,4,256], index: 0, kind: input, shape index: {}]
  %s1 = inlined_call_operand.vmem [shape: bf16[4,32], index: 1, kind: input, shape index: {}]
  %s2 = inlined_call_operand.vmem [shape: f32[1,32], index: 2, kind: input, shape index: {}]
  %s3 = inlined_call_operand.vmem [shape: bf16[32,64], index: 3, kind: input, shape index: {}]
  %s4 = inlined_call_operand.vmem [shape: f32[1,64], index: 4, kind: input, shape index: {}]
  %s5 = inlined_call_operand.vmem [shape: bf16[64,128], index: 5, kind: input, shape index: {}]
  %s6 = inlined_call_operand.vmem [shape: f32[1,128], index: 6, kind: input, shape index: {}]
  %s7 = inlined_call_operand.vmem [shape: f32[8,128], index: 7, kind: output, shape index: {}]
  %s8 = sld [smem:[#allocation0]]
  $region38: #{forward.1} parent=0
    _
  %s10 = ssub.s32 1, %s8
  %s11 = scalar_select 0, %s10, %s8
  // Predicated region
  $region2: #{forward.1} parent=0 // pred_check
    _
  $region3: #{forward.1} parent=0 // pred_check_branch
    %13 = sbr.rel (0) target = $region5
  $region4: #{forward.1} parent=0 // pred_region
    _
  $region5: #{forward.1} parent=0 // pred_fallthru
    _
  // Predicated region
  $region6: #{forward.1} parent=0 // pred_check
    _
  $region7: #{forward.1} parent=0 // pred_check_branch
    %15 = sbr.rel (0) target = $region9
  $region8: #{forward.1} parent=0 // pred_region
    _
  $region9: #{forward.1} parent=0 // pred_fallthru
    _
  // Predicated region
  $region10: #{forward.1} parent=0 // pred_check
    _
  $region11: #{forward.1} parent=0 // pred_check_branch
    %17 = sbr.rel (0) target = $region13
  $region12: #{forward.1} parent=0 // pred_region
    _
  $region13: #{forward.1} parent=0 // pred_fallthru
    _
  // Predicated region
  $region14: #{forward.1} parent=0 // pred_check
    _
  $region15: #{forward.1} parent=0 // pred_check_branch
    %19 = sbr.rel (0) target = $region17
  $region16: #{forward.1} parent=0 // pred_region
    _
  $region17: #{forward.1} parent=0 // pred_fallthru
    _
  // Predicated region
  $region18: #{forward.1} parent=0 // pred_check
    _
  $region19: #{forward.1} parent=0 // pred_check_branch
    %21 = sbr.rel (0) target = $region21
  $region20: #{forward.1} parent=0 // pred_region
    _
  $region21: #{forward.1} parent=0 // pred_fallthru
    _
  // Predicated region
  $region22: #{forward.1} parent=0 // pred_check
    _
  $region23: #{forward.1} parent=0 // pred_check_branch
    %23 = sbr.rel (0) target = $region25
  $region24: #{forward.1} parent=0 // pred_region
    _
  $region25: #{forward.1} parent=0 // pred_fallthru
    _
  // Predicated region
  $region26: #{forward.1} parent=0 // pred_check
    _
  $region27: #{forward.1} parent=0 // pred_check_branch
    %25 = sbr.rel (0) target = $region29
  $region28: #{forward.1} parent=0 // pred_region
    _
  $region29: #{forward.1} parent=0 // pred_fallthru
    _
  %v27 = vld [vmem:[%s0] sm:$0xff]
  %v28 = vld [vmem:[%s0 + $0x8] sm:$0xff]
  %v29 = vld [vmem:[%s0 + $0x10] sm:$0xff]
  %v30 = vld [vmem:[%s0 + $0x18] sm:$0xff]
  %v31 = vld [vmem:[%s0 + $0x20] sm:$0xff]
  %v32 = vld [vmem:[%s0 + $0x28] sm:$0xff]
  %v33 = vld [vmem:[%s0 + $0x30] sm:$0xff]
  %v34 = vld [vmem:[%s0 + $0x38] sm:$0xff]
  %v43 = vcombine.high %v27, %v27
  %v44 = vcombine.high %v28, %v28
  %v45 = vcombine.high %v29, %v29
  %v46 = vcombine.high %v30, %v30
  %v47 = vcombine.high %v31, %v31
  %v48 = vcombine.high %v32, %v32
  %v49 = vcombine.high %v33, %v33
  %v50 = vcombine.high %v34, %v34
  %vm59 = vcmask 1043456
  %v60 = vsel %vm59, %v27, 0.0
  %v61 = vsel %vm59, %v43, 0.0
  %v62 = vadd.f32 %v60, %v61
  %63 = vadd.xlane.f32.xlu0 %v62
  %v64 = vpop.xlane.xlu0 %63
  %v65 = vsel %vm59, %v28, 0.0
  %v66 = vsel %vm59, %v44, 0.0
  %v67 = vadd.f32 %v65, %v66
  %68 = vadd.xlane.f32.xlu0 %v67
  %v69 = vpop.xlane.xlu0 %68
  %v70 = vsel %vm59, %v29, 0.0
  %v71 = vsel %vm59, %v45, 0.0
  %v72 = vadd.f32 %v70, %v71
  %73 = vadd.xlane.f32.xlu0 %v72
  %v74 = vpop.xlane.xlu0 %73
  %v75 = vsel %vm59, %v30, 0.0
  %v76 = vsel %vm59, %v46, 0.0
  %v77 = vadd.f32 %v75, %v76
  %78 = vadd.xlane.f32.xlu0 %v77
  %v79 = vpop.xlane.xlu0 %78
  %v80 = vsel %vm59, %v31, 0.0
  %v81 = vsel %vm59, %v47, 0.0
  %v82 = vadd.f32 %v80, %v81
  %83 = vadd.xlane.f32.xlu0 %v82
  %v84 = vpop.xlane.xlu0 %83
  %v85 = vsel %vm59, %v32, 0.0
  %v86 = vsel %vm59, %v48, 0.0
  %v87 = vadd.f32 %v85, %v86
  %88 = vadd.xlane.f32.xlu0 %v87
  %v89 = vpop.xlane.xlu0 %88
  %v90 = vsel %vm59, %v33, 0.0
  %v91 = vsel %vm59, %v49, 0.0
  %v92 = vadd.f32 %v90, %v91
  %93 = vadd.xlane.f32.xlu0 %v92
  %v94 = vpop.xlane.xlu0 %93
  %v95 = vsel %vm59, %v34, 0.0
  %v96 = vsel %vm59, %v50, 0.0
  %v97 = vadd.f32 %v95, %v96
  %98 = vadd.xlane.f32.xlu0 %v97
  %v99 = vpop.xlane.xlu0 %98
  %v100 = vrcp.pop 256.0
  %v101 = vmul.f32 %v64, %v100
  %v102 = vmul.f32 %v69, %v100
  %v103 = vmul.f32 %v74, %v100
  %v104 = vmul.f32 %v79, %v100
  %v105 = vmul.f32 %v84, %v100
  %v106 = vmul.f32 %v89, %v100
  %v107 = vmul.f32 %v94, %v100
  %v108 = vmul.f32 %v99, %v100
  %v109 = vpack.c.bf16 %v101, %v101
  %v110 = vpack.c.bf16 %v102, %v102
  %v111 = vpack.c.bf16 %v103, %v103
  %v112 = vpack.c.bf16 %v104, %v104
  %v113 = vpack.c.bf16 %v105, %v105
  %v114 = vpack.c.bf16 %v106, %v106
  %v115 = vpack.c.bf16 %v107, %v107
  %v116 = vpack.c.bf16 %v108, %v108
  %v117 = vld [vmem:[%s1] sm:$0x3]
  %v118 = vld [vmem:[%s2] sm:$0x1]
  %v120 = vlaneseq
  %v121 = vshrl.u32 %v120, 7
  %v122 = vsub.s32 0, %v121
  %v123 = vrot.slane %v118, %v122
  %v133 = vunpack.c.l.b16 %v109
  %v134 = vunpack.c.l.b16 %v110
  %v135 = vunpack.c.l.b16 %v111
  %v136 = vunpack.c.l.b16 %v112
  %v137 = vunpack.c.l.b16 %v113
  %v138 = vunpack.c.l.b16 %v114
  %v139 = vunpack.c.l.b16 %v115
  %v140 = vunpack.c.l.b16 %v116
  %v141 = vlaneseq
  %v142 = vand.u32 %v141, 127
  %v143 = vlaneseq
  %v144 = vshrl.u32 %v143, 7
  %v145 = vsub.s32 %v142, %v144
  %v146 = vrot.slane %v133, %v145
  %v147 = vlaneseq
  %v148 = vshrl.u32 %v147, 7
  %v149 = vsub.s32 %v142, %v148
  %v150 = vrot.slane %v134, %v149
  %v151 = vlaneseq
  %v152 = vshrl.u32 %v151, 7
  %v153 = vsub.s32 %v142, %v152
  %v154 = vrot.slane %v135, %v153
  %v155 = vlaneseq
  %v156 = vshrl.u32 %v155, 7
  %v157 = vsub.s32 %v142, %v156
  %v158 = vrot.slane %v136, %v157
  %v159 = vlaneseq
  %v160 = vshrl.u32 %v159, 7
  %v161 = vsub.s32 %v142, %v160
  %v162 = vrot.slane %v137, %v161
  %v163 = vlaneseq
  %v164 = vshrl.u32 %v163, 7
  %v165 = vsub.s32 %v142, %v164
  %v166 = vrot.slane %v138, %v165
  %v167 = vlaneseq
  %v168 = vshrl.u32 %v167, 7
  %v169 = vsub.s32 %v142, %v168
  %v170 = vrot.slane %v139, %v169
  %v171 = vlaneseq
  %v172 = vshrl.u32 %v171, 7
  %v173 = vsub.s32 %v142, %v172
  %v174 = vrot.slane %v140, %v173
  %vm175 = vcmask 1041409
  %v176 = vsel %vm175, %v150, %v146
  %vm177 = vcmask 1042434
  %v178 = vsel %vm177, %v154, %v176
  %vm179 = vcmask 1043459
  %v180 = vsel %vm179, %v158, %v178
  %vm181 = vcmask 1044484
  %v182 = vsel %vm181, %v162, %v180
  %vm183 = vcmask 1045509
  %v184 = vsel %vm183, %v166, %v182
  %vm185 = vcmask 1046534
  %v186 = vsel %vm185, %v170, %v184
  %vm187 = vcmask 1047559
  %v188 = vsel %vm187, %v174, %v186
  %v189 = vpack.c.b16 %v188, %v188
  %vm190 = vcmask 31744
  %v192 = vsel %vm190, %v189, 0
  %vm194 = vcmask 1041408
  %v196 = vsel %vm194, %v117, 0
  %198 = vmatprep.subr.bf16.mxu0 0
  %199 = vmatpush1.bf16.msra.mxu0 %v196
  %200 = vmatprep.subr.bf16.mxu0 0
  %201 = vmatpush1.bf16.msra.mxu0 0
  %202 = vmatprep.subr.bf16.mxu0 0
  %203 = vmatpush1.bf16.msra.mxu0 0
  %204 = vmatprep.subr.bf16.mxu0 0
  %205 = vmatpush1.bf16.msra.mxu0 0
  %206 = vmatprep.subr.bf16.mxu0 0
  %207 = vmatpush1.bf16.msra.mxu0 0
  %208 = vmatprep.subr.bf16.mxu0 0
  %209 = vmatpush1.bf16.msra.mxu0 0
  %210 = vmatprep.subr.bf16.mxu0 0
  %211 = vmatpush1.bf16.msra.mxu0 0
  %212 = vmatprep.subr.bf16.mxu0 0
  %213 = vmatpush1.bf16.msra.mxu0 0
  %214 = vmatprep.subr.bf16.mxu0 0
  %215 = vmatpush1.bf16.msra.mxu0 0
  %216 = vmatprep.subr.bf16.mxu0 0
  %217 = vmatpush1.bf16.msra.mxu0 0
  %218 = vmatprep.subr.bf16.mxu0 0
  %219 = vmatpush1.bf16.msra.mxu0 0
  %220 = vmatprep.subr.bf16.mxu0 0
  %221 = vmatpush1.bf16.msra.mxu0 0
  %222 = vmatprep.subr.bf16.mxu0 0
  %223 = vmatpush1.bf16.msra.mxu0 0
  %224 = vmatprep.subr.bf16.mxu0 0
  %225 = vmatpush1.bf16.msra.mxu0 0
  %226 = vmatprep.subr.bf16.mxu0 0
  %227 = vmatpush1.bf16.msra.mxu0 0
  %228 = vmatprep.subr.bf16.mxu0 0
  %229 = vmatpush1.bf16.msra.mxu0 0
  %230 = vmatprep.mubr.bf16.mxu0 0
  %231 = vmatmul.mubr.bf16.gmra.mrb[0].mxu0 %v192
  %v232 = vpop.f32.mrb[0].mxu0
  %v233 = vadd.f32 %v123, %v232
  %v234 = vpop.f32.mrb[0].mxu0
  %v235 = vpop.f32.mrb[0].mxu0
  %v236 = vpop.f32.mrb[0].mxu0
  %237 = vdwg.mxu0
  %v238 = vmax.f32 %v233, 0.0
  %v239 = vpack.c.bf16 %v238, %v238
  %v240 = vld [vmem:[%s3] sm:$0xf]
  %v241 = vld [vmem:[%s3 + $0x4] sm:$0xf]
  %v242 = vld [vmem:[%s3 + $0x8] sm:$0xf]
  %v243 = vld [vmem:[%s3 + $0xc] sm:$0xf]
  %v244 = vld [vmem:[%s4] sm:$0x1]
  %v246 = vlaneseq
  %v247 = vshrl.u32 %v246, 7
  %v248 = vsub.s32 0, %v247
  %v249 = vrot.slane %v244, %v248
  %v255 = vunpack.c.l.b16 %v240
  %v256 = vunpack.c.l.b16 %v241
  %v257 = vunpack.c.l.b16 %v242
  %v258 = vunpack.c.l.b16 %v243
  %v259 = vpack.c.b16 %v256, %v255
  %v260 = vpack.c.b16 %v258, %v257
  %vm263 = vcmask 261120
  %v265 = vsel %vm263, %v239, 0
  %267 = vmatprep.subr.bf16.mxu0 0
  %268 = vmatpush1.bf16.msra.mxu0 %v259
  %269 = vmatprep.subr.bf16.mxu0 0
  %270 = vmatpush1.bf16.msra.mxu0 %v260
  %271 = vmatprep.subr.bf16.mxu0 0
  %272 = vmatpush1.bf16.msra.mxu0 0
  %273 = vmatprep.subr.bf16.mxu0 0
  %274 = vmatpush1.bf16.msra.mxu0 0
  %275 = vmatprep.subr.bf16.mxu0 0
  %276 = vmatpush1.bf16.msra.mxu0 0
  %277 = vmatprep.subr.bf16.mxu0 0
  %278 = vmatpush1.bf16.msra.mxu0 0
  %279 = vmatprep.subr.bf16.mxu0 0
  %280 = vmatpush1.bf16.msra.mxu0 0
  %281 = vmatprep.subr.bf16.mxu0 0
  %282 = vmatpush1.bf16.msra.mxu0 0
  %283 = vmatprep.subr.bf16.mxu0 0
  %284 = vmatpush1.bf16.msra.mxu0 0
  %285 = vmatprep.subr.bf16.mxu0 0
  %286 = vmatpush1.bf16.msra.mxu0 0
  %287 = vmatprep.subr.bf16.mxu0 0
  %288 = vmatpush1.bf16.msra.mxu0 0
  %289 = vmatprep.subr.bf16.mxu0 0
  %290 = vmatpush1.bf16.msra.mxu0 0
  %291 = vmatprep.subr.bf16.mxu0 0
  %292 = vmatpush1.bf16.msra.mxu0 0
  %293 = vmatprep.subr.bf16.mxu0 0
  %294 = vmatpush1.bf16.msra.mxu0 0
  %295 = vmatprep.subr.bf16.mxu0 0
  %296 = vmatpush1.bf16.msra.mxu0 0
  %297 = vmatprep.subr.bf16.mxu0 0
  %298 = vmatpush1.bf16.msra.mxu0 0
  %299 = vmatprep.mubr.bf16.mxu0 0
  %300 = vmatmul.mubr.bf16.gmra.mrb[0].mxu0 %v265
  %v301 = vpop.f32.mrb[0].mxu0
  %v302 = vadd.f32 %v249, %v301
  %v303 = vpop.f32.mrb[0].mxu0
  %v304 = vpop.f32.mrb[0].mxu0
  %v305 = vpop.f32.mrb[0].mxu0
  %306 = vdwg.mxu0
  %v307 = vmax.f32 %v302, 0.0
  %v308 = vpack.c.bf16 %v307, %v307
  %v309 = vld [vmem:[%s5] sm:$0xf]
  %v310 = vld [vmem:[%s5 + $0x4] sm:$0xf]
  %v311 = vld [vmem:[%s5 + $0x8] sm:$0xf]
  %v312 = vld [vmem:[%s5 + $0xc] sm:$0xf]
  %v313 = vld [vmem:[%s5 + $0x10] sm:$0xf]
  %v314 = vld [vmem:[%s5 + $0x14] sm:$0xf]
  %v315 = vld [vmem:[%s5 + $0x18] sm:$0xf]
  %v316 = vld [vmem:[%s5 + $0x1c] sm:$0xf]
  %v317 = vld [vmem:[%s6] sm:$0x1]
  %v319 = vlaneseq
  %v320 = vshrl.u32 %v319, 7
  %v321 = vsub.s32 0, %v320
  %v322 = vrot.slane %v317, %v321
  %v332 = vunpack.c.l.b16 %v309
  %v333 = vunpack.c.l.b16 %v310
  %v334 = vunpack.c.l.b16 %v311
  %v335 = vunpack.c.l.b16 %v312
  %v336 = vunpack.c.l.b16 %v313
  %v337 = vunpack.c.l.b16 %v314
  %v338 = vunpack.c.l.b16 %v315
  %v339 = vunpack.c.l.b16 %v316
  %v340 = vpack.c.b16 %v333, %v332
  %v341 = vpack.c.b16 %v335, %v334
  %v342 = vpack.c.b16 %v337, %v336
  %v343 = vpack.c.b16 %v339, %v338
  %vm348 = vcmask 523264
  %v350 = vsel %vm348, %v308, 0
  %352 = vmatprep.subr.bf16.mxu0 0
  %353 = vmatpush1.bf16.msra.mxu0 %v340
  %354 = vmatprep.subr.bf16.mxu0 0
  %355 = vmatpush1.bf16.msra.mxu0 %v341
  %356 = vmatprep.subr.bf16.mxu0 0
  %357 = vmatpush1.bf16.msra.mxu0 %v342
  %358 = vmatprep.subr.bf16.mxu0 0
  %359 = vmatpush1.bf16.msra.mxu0 %v343
  %360 = vmatprep.subr.bf16.mxu0 0
  %361 = vmatpush1.bf16.msra.mxu0 0
  %362 = vmatprep.subr.bf16.mxu0 0
  %363 = vmatpush1.bf16.msra.mxu0 0
  %364 = vmatprep.subr.bf16.mxu0 0
  %365 = vmatpush1.bf16.msra.mxu0 0
  %366 = vmatprep.subr.bf16.mxu0 0
  %367 = vmatpush1.bf16.msra.mxu0 0
  %368 = vmatprep.subr.bf16.mxu0 0
  %369 = vmatpush1.bf16.msra.mxu0 0
  %370 = vmatprep.subr.bf16.mxu0 0
  %371 = vmatpush1.bf16.msra.mxu0 0
  %372 = vmatprep.subr.bf16.mxu0 0
  %373 = vmatpush1.bf16.msra.mxu0 0
  %374 = vmatprep.subr.bf16.mxu0 0
  %375 = vmatpush1.bf16.msra.mxu0 0
  %376 = vmatprep.subr.bf16.mxu0 0
  %377 = vmatpush1.bf16.msra.mxu0 0
  %378 = vmatprep.subr.bf16.mxu0 0
  %379 = vmatpush1.bf16.msra.mxu0 0
  %380 = vmatprep.subr.bf16.mxu0 0
  %381 = vmatpush1.bf16.msra.mxu0 0
  %382 = vmatprep.subr.bf16.mxu0 0
  %383 = vmatpush1.bf16.msra.mxu0 0
  %384 = vmatprep.mubr.bf16.mxu0 0
  %385 = vmatmul.mubr.bf16.gmra.mrb[0].mxu0 %v350
  %v386 = vpop.f32.mrb[0].mxu0
  %v387 = vadd.f32 %v322, %v386
  %v388 = vpop.f32.mrb[0].mxu0
  %v389 = vpop.f32.mrb[0].mxu0
  %v390 = vpop.f32.mrb[0].mxu0
  %391 = vdwg.mxu0
  %vm392 = vcmp.lt.s32.totalorder %v142, 16
  %vm393 = vcmp.ge.s32.totalorder %v142, 16
  %vm394 = vcmp.lt.s32.totalorder %v142, 24
  %vm395 = vmand %vm393, %vm394
  %v396 = vmul.f32 %v387, %v387
  %v397 = vsel %vm392, %v396, 0.0
  %398 = vadd.xlane.f32.xlu0 %v397
  %v399 = vpop.xlane.xlu0 %398
  %v400 = vmax.f32 %v399, 1e-24
  %v401 = vrsqrt.pop %v400
  %v402 = vsel %vm395, %v387, -1e+30
  %403 = vmax.xlane.f32.xlu0 %v402
  %v404 = vpop.xlane.xlu0 %403
  %v405 = vsub.f32 %v402, %v404
  %v406 = vmul.f32 %v405, 1.442695
  %v407 = vpow.pop %v406
  %408 = vadd.xlane.f32.xlu0 %v407
  %v409 = vpop.xlane.xlu0 %408
  %v410 = vrcp.pop %v409
  %v411 = vmul.f32 %v387, %v401
  %v412 = vmul.f32 %v407, %v410
  %v413 = vsel %vm392, %v411, %v412
  %414 = vst [vmem:[%s7] sm:$0xff] %v413
  // Predicated region
  $region30: #{forward.1} parent=0 // pred_check
    _
  $region31: #{forward.1} parent=0 // pred_check_branch
    %416 = sbr.rel (0) target = $region33
  $region32: #{forward.1} parent=0 // pred_region
    _
  $region33: #{forward.1} parent=0 // pred_fallthru
    _
  // Predicated region
  $region34: #{forward.1} parent=0 // pred_check
    _
  $region35: #{forward.1} parent=0 // pred_check_branch
    %418 = sbr.rel (0) target = $region37
  $region36: #{forward.1} parent=0 // pred_region
    _
  $region37: #{forward.1} parent=0 // pred_fallthru
    _

</llo_original>
